<compile_context>
chip_gen: v7x
topology: tpu7x:2x2x1
jax: 0.10.0
libtpu: 0.0.40
codegen_flags: <defaults>
</compile_context>

<pallas_src>
import functools

import jax
import jax.numpy as jnp
from jax.experimental import pallas as pl
from jax.experimental.pallas import tpu as pltpu


def _round_up(x, m):
    return ((x + m - 1) // m) * m


def _softplus(x):
    # numerically stable softplus, same semantics as F.softplus(x)
    return jnp.maximum(x, 0.0) + jnp.log1p(jnp.exp(-jnp.abs(x)))


def _dng_kernel(x_ref, w_ref, b_ref, out_ref, *, dp):
    # x_ref: [TB, in_pad] (bf16)   w_ref: [in_pad, 4*dp] (bf16, resident)
    # b_ref: [1, 4*dp] (f32)       out_ref: [TB, 6*dp] (f32, lane-dense)
    x = x_ref[...]
    w = w_ref[...]

    # MXU matmul: bf16 operands, f32 accumulation.  f32 bias add on the VPU.
    pre = jnp.dot(x, w, preferred_element_type=jnp.float32) + b_ref[...]

    # Each head occupies a whole 128-aligned lane band -> these slices are
    # lane-tile aligned (no relayout copies).
    mu       = pre[:, 0 * dp:1 * dp]
    logv     = pre[:, 1 * dp:2 * dp]
    logalpha = pre[:, 2 * dp:3 * dp]
    logbeta  = pre[:, 3 * dp:4 * dp]

    v        = _softplus(logv)
    alpha_m1 = _softplus(logalpha)          # = alpha - 1 (avoids (s+1)-1 cancellation)
    beta     = _softplus(logbeta)

    # Replace the two divides with reciprocal + multiply.  approx=False keeps
    # full precision on these ratio outputs (they amplify error near small
    # denominators); flip to approx=True only if tolerance allows.
    inv_am1 = pl.reciprocal(alpha_m1, approx=False)
    inv_v   = pl.reciprocal(v, approx=False)
    aleatoric = beta * inv_am1
    epistemic = beta * inv_v * alpha_m1

    # Six stores, each to a 128-aligned static band of the fused output
    # (lane-dense, unmasked vst).
    out_ref[:, 0 * dp:1 * dp] = mu
    out_ref[:, 1 * dp:2 * dp] = v
    out_ref[:, 2 * dp:3 * dp] = alpha_m1 + 1.0
    out_ref[:, 3 * dp:4 * dp] = beta
    out_ref[:, 4 * dp:5 * dp] = aleatoric
    out_ref[:, 5 * dp:6 * dp] = epistemic


def pack_dng_params(weight, bias, out_dim, *, mxu_dtype=jnp.bfloat16):
    """Done ONCE at parameter-init time (not per forward call).

    weight: [4*out_dim, in_dim] (torch nn.Linear layout), bias: [4*out_dim].
    Returns (w_packed [in_pad, 4*dp] mxu_dtype, b_packed [1, 4*dp] f32).
    Each head k occupies lane band [k*dp, (k+1)*dp) with dp = round_up(out_dim, 128).
    """
    four_d, in_dim = weight.shape
    assert four_d == 4 * out_dim
    dp = _round_up(out_dim, 128)
    in_pad = _round_up(in_dim, 128)

    w4 = weight.reshape(4, out_dim, in_dim)
    w_pad = jnp.zeros((4, dp, in_pad), weight.dtype).at[:, :out_dim, :in_dim].set(w4)
    w_packed = w_pad.transpose(2, 0, 1).reshape(in_pad, 4 * dp).astype(mxu_dtype)

    b_pad = jnp.zeros((4, dp), jnp.float32).at[:, :out_dim].set(
        bias.astype(jnp.float32).reshape(4, out_dim))
    b_packed = b_pad.reshape(1, 4 * dp)
    return w_packed, b_packed


def dense_normal_gamma(x, w_packed, b_packed, out_dim, *, max_batch_tile=512):
    """x: [B, in_dim] f32; packed params from pack_dng_params.
    Returns (mu, v, alpha, beta, aleatoric, epistemic), each [B, out_dim] f32."""
    b_sz, in_dim = x.shape
    in_pad, four_dp = w_packed.shape
    dp = four_dp // 4
    mxu_dtype = w_packed.dtype
    itemsize = jnp.dtype(mxu_dtype).itemsize

    # ---- batch tile selection (multiple of 16 covers f32 + bf16 sublane tiling) ----
    tb = min(max_batch_tile, max(16, _round_up(b_sz, 16)))

    # Double-buffered x + out tiles, plus the resident (double-buffered) weight,
    # kept under a v7x-safe budget (~40 MiB of its 64 MiB VMEM).
    w_bytes = 2 * (in_pad * four_dp * itemsize + four_dp * 4)

    def tiles_bytes(t):
        return 2 * (t * in_pad * itemsize + t * 6 * dp * 4)

    budget = 40 * 1024 * 1024
    while tb > 16 and tiles_bytes(tb) + w_bytes > budget:
        tb //= 2

    b_pad = _round_up(max(b_sz, tb), tb)
    grid = (b_pad // tb,)

    x_p = jnp.zeros((b_pad, in_pad), mxu_dtype).at[:b_sz, :in_dim].set(x.astype(mxu_dtype))

    kernel = functools.partial(_dng_kernel, dp=dp)

    cost = pl.CostEstimate(
        flops=2 * b_pad * in_pad * four_dp,
        transcendentals=8 * b_pad * dp,          # 3 exp + 3 log1p + 2 recip per output elem
        bytes_accessed=(x_p.size * itemsize + w_packed.size * itemsize
                        + b_packed.size * 4 + b_pad * 6 * dp * 4),
    )
    vmem_limit = int(min(max(tiles_bytes(tb) + w_bytes + (4 << 20), 32 << 20), 56 << 20))

    # NOTE: weight/bias block index never changes across the grid, so Pallas keeps
    # them resident (DMA'd once).  pipeline_mode=pl.Buffered(1) could halve their
    # VMEM footprint further, but they are small relative to the budget here.
    fused = pl.pallas_call(
        kernel,
        out_shape=jax.ShapeDtypeStruct((b_pad, 6 * dp), jnp.float32),
        grid=grid,
        in_specs=[
            pl.BlockSpec((tb, in_pad), lambda i: (i, 0)),
            pl.BlockSpec((in_pad, four_dp), lambda i: (0, 0)),
            pl.BlockSpec((1, four_dp), lambda i: (0, 0)),
        ],
        out_specs=pl.BlockSpec((tb, 6 * dp), lambda i: (i, 0)),
        compiler_params=pltpu.CompilerParams(
            dimension_semantics=("parallel",),
            vmem_limit_bytes=vmem_limit,
        ),
        cost_estimate=cost,
    )(x_p, w_packed, b_packed)

    fused = fused[:b_sz]
    return tuple(fused[:, k * dp:k * dp + out_dim] for k in range(6))


def _reference(x, weight, bias, out_dim, mxu_dtype=jnp.bfloat16):
    # Same math as the torch module; matmul in the same MXU dtype as the kernel.
    pre = jnp.dot(x.astype(mxu_dtype), weight.T.astype(mxu_dtype),
                  preferred_element_type=jnp.float32) + bias.astype(jnp.float32)
    mu, logv, logalpha, logbeta = jnp.split(pre, 4, axis=-1)
    v = jax.nn.softplus(logv)
    alpha = jax.nn.softplus(logalpha) + 1.0
    beta = jax.nn.softplus(logbeta)
    aleatoric = beta / (alpha - 1.0)
    epistemic = beta / v * (alpha - 1.0)
    return mu, v, alpha, beta, aleatoric, epistemic


if __name__ == "__main__":
    in_dim = 32
    out_dim = 16
    batch = 8

    key = jax.random.PRNGKey(0)
    kx, kw, kb = jax.random.split(key, 3)

    # Deterministic synthetic parameters (same shapes as nn.Linear(in_dim, 4*out_dim)).
    bound = 1.0 / (in_dim ** 0.5)
    weight = jax.random.uniform(kw, (4 * out_dim, in_dim), jnp.float32, -bound, bound)
    bias = jax.random.uniform(kb, (4 * out_dim,), jnp.float32, -bound, bound)
    x = jax.random.normal(kx, (batch, in_dim), jnp.float32)

    # Pack parameters once (layout plumbing happens here, not per forward call).
    w_packed, b_packed = pack_dng_params(weight, bias, out_dim)

    outs = dense_normal_gamma(x, w_packed, b_packed, out_dim)
    outs = jax.block_until_ready(outs)

    refs = _reference(x, weight, bias, out_dim)
    for o, r in zip(outs, refs):
        assert o.shape == (batch, out_dim)
        assert jnp.allclose(o, r, atol=2e-3, rtol=2e-3), float(jnp.max(jnp.abs(o - r)))

    print("KERNEL_OK")
</pallas_src>

<mosaic_0001>
module attributes {stable_mosaic.version = 11 : i64} {
  func.func @_dng_kernel(%arg0: i32, %arg1: memref<16x128xbf16, #tpu.memory_space<vmem>>, %arg2: memref<128x512xbf16, #tpu.memory_space<vmem>>, %arg3: memref<1x512xf32, #tpu.memory_space<vmem>>, %arg4: memref<16x768xf32, #tpu.memory_space<vmem>>) attributes {dimension_semantics = [#tpu.dimension_semantics<parallel>], iteration_bounds = array<i64: 1>, scalar_prefetch = 0 : i64, scratch_operands = 0 : i64, tpu.core_type = #tpu.core_type<tc>, window_params = [{transform_indices = @transform_0, window_bounds = array<i64: 16, 128>}, {pipeline_mode = #tpu.pipeline_mode<synchronous>, transform_indices = @transform_1, window_bounds = array<i64: 128, 512>}, {pipeline_mode = #tpu.pipeline_mode<synchronous>, transform_indices = @transform_2, window_bounds = array<i64: 1, 512>}, {transform_indices = @transform_3, window_bounds = array<i64: 16, 768>}]} {
    %c0 = arith.constant 0 : index
    %c0_0 = arith.constant 0 : index
    %0 = vector.load %arg1[%c0, %c0_0] : memref<16x128xbf16, #tpu.memory_space<vmem>>, vector<16x128xbf16>
    %c0_1 = arith.constant 0 : index
    %c0_2 = arith.constant 0 : index
    %1 = vector.load %arg2[%c0_1, %c0_2] : memref<128x512xbf16, #tpu.memory_space<vmem>>, vector<128x512xbf16>
    %cst = arith.constant dense<0.000000e+00> : vector<16x512xf32>
    %2 = tpu.matmul %0, %1, %cst {dimension_numbers = #tpu.dot_dimension_numbers<[1], [0], [0], [1], [0, 0, 1, 1], [], []>} : vector<16x128xbf16>, vector<128x512xbf16>, vector<16x512xf32> -> vector<16x512xf32>
    %c0_3 = arith.constant 0 : index
    %c0_4 = arith.constant 0 : index
    %3 = vector.load %arg3[%c0_3, %c0_4] : memref<1x512xf32, #tpu.memory_space<vmem>>, vector<1x512xf32>
    %4 = vector.broadcast %3 : vector<1x512xf32> to vector<16x512xf32>
    %5 = arith.addf %2, %4 : vector<16x512xf32>
    %6 = vector.extract_strided_slice %5 {offsets = [0, 0], sizes = [16, 128], strides = [1, 1]} : vector<16x512xf32> to vector<16x128xf32>
    %7 = vector.extract_strided_slice %5 {offsets = [0, 128], sizes = [16, 128], strides = [1, 1]} : vector<16x512xf32> to vector<16x128xf32>
    %8 = vector.extract_strided_slice %5 {offsets = [0, 256], sizes = [16, 128], strides = [1, 1]} : vector<16x512xf32> to vector<16x128xf32>
    %9 = vector.extract_strided_slice %5 {offsets = [0, 384], sizes = [16, 128], strides = [1, 1]} : vector<16x512xf32> to vector<16x128xf32>
    %cst_5 = arith.constant 0.000000e+00 : f32
    %10 = vector.broadcast %cst_5 : f32 to vector<16x128xf32>
    %11 = arith.maximumf %7, %10 : vector<16x128xf32>
    %12 = math.absf %7 : vector<16x128xf32>
    %cst_6 = arith.constant 0.000000e+00 : f32
    %13 = vector.broadcast %cst_6 : f32 to vector<16x128xf32>
    %14 = arith.subf %13, %12 : vector<16x128xf32>
    %15 = math.exp %14 : vector<16x128xf32>
    %16 = math.log1p %15 : vector<16x128xf32>
    %17 = arith.addf %11, %16 : vector<16x128xf32>
    %cst_7 = arith.constant 0.000000e+00 : f32
    %18 = vector.broadcast %cst_7 : f32 to vector<16x128xf32>
    %19 = arith.maximumf %8, %18 : vector<16x128xf32>
    %20 = math.absf %8 : vector<16x128xf32>
    %cst_8 = arith.constant 0.000000e+00 : f32
    %21 = vector.broadcast %cst_8 : f32 to vector<16x128xf32>
    %22 = arith.subf %21, %20 : vector<16x128xf32>
    %23 = math.exp %22 : vector<16x128xf32>
    %24 = math.log1p %23 : vector<16x128xf32>
    %25 = arith.addf %19, %24 : vector<16x128xf32>
    %cst_9 = arith.constant 0.000000e+00 : f32
    %26 = vector.broadcast %cst_9 : f32 to vector<16x128xf32>
    %27 = arith.maximumf %9, %26 : vector<16x128xf32>
    %28 = math.absf %9 : vector<16x128xf32>
    %cst_10 = arith.constant 0.000000e+00 : f32
    %29 = vector.broadcast %cst_10 : f32 to vector<16x128xf32>
    %30 = arith.subf %29, %28 : vector<16x128xf32>
    %31 = math.exp %30 : vector<16x128xf32>
    %32 = math.log1p %31 : vector<16x128xf32>
    %33 = arith.addf %27, %32 : vector<16x128xf32>
    %34 = tpu.reciprocal %25 : vector<16x128xf32> -> vector<16x128xf32>
    %35 = tpu.reciprocal %17 : vector<16x128xf32> -> vector<16x128xf32>
    %36 = arith.mulf %33, %34 : vector<16x128xf32>
    %37 = arith.mulf %33, %35 : vector<16x128xf32>
    %38 = arith.mulf %37, %25 : vector<16x128xf32>
    %c0_11 = arith.constant 0 : index
    %c0_12 = arith.constant 0 : index
    %39 = vector.load %arg4[%c0_11, %c0_12] : memref<16x768xf32, #tpu.memory_space<vmem>>, vector<16x128xf32>
    tpu.vector_store %arg4[%c0_11, %c0_12], %6 {strides = array<i32>} : memref<16x768xf32, #tpu.memory_space<vmem>>, vector<16x128xf32>,
    %c0_13 = arith.constant 0 : index
    %c128 = arith.constant 128 : index
    %40 = vector.load %arg4[%c0_13, %c128] : memref<16x768xf32, #tpu.memory_space<vmem>>, vector<16x128xf32>
    tpu.vector_store %arg4[%c0_13, %c128], %17 {strides = array<i32>} : memref<16x768xf32, #tpu.memory_space<vmem>>, vector<16x128xf32>,
    %cst_14 = arith.constant 1.000000e+00 : f32
    %41 = vector.broadcast %cst_14 : f32 to vector<16x128xf32>
    %42 = arith.addf %25, %41 : vector<16x128xf32>
    %c0_15 = arith.constant 0 : index
    %c256 = arith.constant 256 : index
    %43 = vector.load %arg4[%c0_15, %c256] : memref<16x768xf32, #tpu.memory_space<vmem>>, vector<16x128xf32>
    tpu.vector_store %arg4[%c0_15, %c256], %42 {strides = array<i32>} : memref<16x768xf32, #tpu.memory_space<vmem>>, vector<16x128xf32>,
    %c0_16 = arith.constant 0 : index
    %c384 = arith.constant 384 : index
    %44 = vector.load %arg4[%c0_16, %c384] : memref<16x768xf32, #tpu.memory_space<vmem>>, vector<16x128xf32>
    tpu.vector_store %arg4[%c0_16, %c384], %33 {strides = array<i32>} : memref<16x768xf32, #tpu.memory_space<vmem>>, vector<16x128xf32>,
    %c0_17 = arith.constant 0 : index
    %c512 = arith.constant 512 : index
    %45 = vector.load %arg4[%c0_17, %c512] : memref<16x768xf32, #tpu.memory_space<vmem>>, vector<16x128xf32>
    tpu.vector_store %arg4[%c0_17, %c512], %36 {strides = array<i32>} : memref<16x768xf32, #tpu.memory_space<vmem>>, vector<16x128xf32>,
    %c0_18 = arith.constant 0 : index
    %c640 = arith.constant 640 : index
    %46 = vector.load %arg4[%c0_18, %c640] : memref<16x768xf32, #tpu.memory_space<vmem>>, vector<16x128xf32>
    tpu.vector_store %arg4[%c0_18, %c640], %38 {strides = array<i32>} : memref<16x768xf32, #tpu.memory_space<vmem>>, vector<16x128xf32>,
    return
  }
  func.func @transform_0(%arg0: i32) -> (i32, i32) {
    %c0_i32 = arith.constant 0 : i32
    %c0_i32_0 = arith.constant 0 : i32
    return %arg0, %c0_i32 : i32, i32
  }
  func.func @transform_1(%arg0: i32) -> (i32, i32) {
    %c0_i32 = arith.constant 0 : i32
    %c0_i32_0 = arith.constant 0 : i32
    %c0_i32_1 = arith.constant 0 : i32
    return %c0_i32, %c0_i32_0 : i32, i32
  }
  func.func @transform_2(%arg0: i32) -> (i32, i32) {
    %c0_i32 = arith.constant 0 : i32
    %c0_i32_0 = arith.constant 0 : i32
    %c0_i32_1 = arith.constant 0 : i32
    return %c0_i32, %c0_i32_0 : i32, i32
  }
  func.func @transform_3(%arg0: i32) -> (i32, i32) {
    %c0_i32 = arith.constant 0 : i32
    %c0_i32_0 = arith.constant 0 : i32
    return %arg0, %c0_i32 : i32, i32
  }
}

</mosaic_0001>

<llo_original>
// kernel: tpu_custom_call.1
$region0: #{tpu_custom_call.1}
  #allocation0 [shape = 'u32[]', space=smem, size = 0x4, offset = 0x4, fixed_abs, tag = 'smem constant byte address 0x4 - core index']
  #allocation1 [shape = 'u32[144,128]{1,0:T(1,128)}', space=vmem, size = 0x12000, scoped, tag = 'internal scratch']
  %s0 = inlined_call_operand.hbm [shape: bf16[16,128], index: 0, kind: input, shape index: {}]
  %s1 = inlined_call_operand.hbm [shape: bf16[128,512], index: 1, kind: input, shape index: {}]
  %s2 = inlined_call_operand.vmem [shape: f32[1,512], index: 2, kind: input, shape index: {}]
  %s3 = inlined_call_operand.hbm [shape: f32[16,768], index: 3, kind: output, shape index: {}]
  %s4 = sld [smem:[#allocation0]]
  $region30: #{tpu_custom_call.1} parent=0
    _
  %s6 = ssub.s32 1, %s4
  %s7 = scalar_select 0, %s6, %s4
  $region1: #{tpu_custom_call.1} parent=0
    #allocation2 [shape = 'u8[4096]{0}', space=vmem, size = 0x1000, scoped, tag = 'input window, operand 0, single buffered']
    #allocation3 [shape = 's32[1]{0}', space=sflag, size = 0x4, scoped, tag = 'scoped memory for tpu_custom_call.1']
    #allocation4 [shape = 's32[1]{0}', space=sflag, size = 0x4, scoped, tag = 'scoped memory for tpu_custom_call.1']
    #allocation5 [shape = 'u8[131072]{0}', space=vmem, size = 0x20000, scoped, tag = 'input window, operand 1, single buffered']
    #allocation6 [shape = 's32[1]{0}', space=sflag, size = 0x4, scoped, tag = 'scoped memory for tpu_custom_call.1']
    #allocation7 [shape = 'u8[49152]{0}', space=vmem, size = 0xc000, scoped, tag = 'output window, operand 0, single buffered']
    %8 = vsyncpa [#allocation3], 0
    %9 = vsyncpa [#allocation6], 0
    %10 = vsyncpa [#allocation4], 0
    // Predicated region
    $region2: #{tpu_custom_call.1} parent=1 // pred_check
      _
    $region3: #{tpu_custom_call.1} parent=1 // pred_check_branch
      %12 = sbr.rel (0) target = $region5
    $region4: #{tpu_custom_call.1} parent=1 // pred_region
      %s14 = ssub.s32 128, 128
      %15 = vsyncadd [#allocation3], %s14
      %s16 = sshll.u32 [#allocation2], 4
      %s17 = int_to_ptr.vmem [resolvable:$true] %s16
      %22 = dma.hbm_to_vmem [thread:$0]  %s0, 128, %s17, [#allocation3], 64, 64, 4
    $region5: #{tpu_custom_call.1} parent=1 // pred_fallthru
      _
    // Predicated region
    $region6: #{tpu_custom_call.1} parent=1 // pred_check
      _
    $region7: #{tpu_custom_call.1} parent=1 // pred_check_branch
      %24 = sbr.rel (0) target = $region9
    $region8: #{tpu_custom_call.1} parent=1 // pred_region
      %s26 = ssub.s32 4096, 4096
      %27 = vsyncadd [#allocation6], %s26
      %s28 = sshll.u32 [#allocation5], 4
      %s29 = int_to_ptr.vmem [resolvable:$true] %s28
      %34 = dma.hbm_to_vmem [thread:$0]  %s1, 4096, %s29, [#allocation6], 256, 256, 16
    $region9: #{tpu_custom_call.1} parent=1 // pred_fallthru
      _
    // Predicated region
    $region10: #{tpu_custom_call.1} parent=1 // pred_check
      _
    $region11: #{tpu_custom_call.1} parent=1 // pred_check_branch
      %36 = sbr.rel (0) target = $region13
    $region12: #{tpu_custom_call.1} parent=1 // pred_region
      _
    $region13: #{tpu_custom_call.1} parent=1 // pred_fallthru
      _
    // Predicated region
    $region14: #{tpu_custom_call.1} parent=1 // pred_check
      _
    $region15: #{tpu_custom_call.1} parent=1 // pred_check_branch
      %38 = sbr.rel (0) target = $region17
    $region16: #{tpu_custom_call.1} parent=1 // pred_region
      %39 = dma.done [#allocation3], 128
    $region17: #{tpu_custom_call.1} parent=1 // pred_fallthru
      _
    // Predicated region
    $region18: #{tpu_custom_call.1} parent=1 // pred_check
      _
    $region19: #{tpu_custom_call.1} parent=1 // pred_check_branch
      %41 = sbr.rel (0) target = $region21
    $region20: #{tpu_custom_call.1} parent=1 // pred_region
      %42 = dma.done [#allocation6], 4096
    $region21: #{tpu_custom_call.1} parent=1 // pred_fallthru
      _
    %v44 = vld [vmem:[#allocation2] sm:$0xf]
    %v45 = vld [vmem:[#allocation2 + $0x4] sm:$0xf]
    %v46 = vld [vmem:[#allocation5] sm:$0xff]
    %v47 = vld [vmem:[#allocation5 + $0x8] sm:$0xff]
    %v48 = vld [vmem:[#allocation5 + $0x10] sm:$0xff]
    %v49 = vld [vmem:[#allocation5 + $0x18] sm:$0xff]
    %v50 = vld [vmem:[#allocation5 + $0x20] sm:$0xff]
    %v51 = vld [vmem:[#allocation5 + $0x28] sm:$0xff]
    %v52 = vld [vmem:[#allocation5 + $0x30] sm:$0xff]
    %v53 = vld [vmem:[#allocation5 + $0x38] sm:$0xff]
    %v54 = vld [vmem:[#allocation5 + $0x40] sm:$0xff]
    %v55 = vld [vmem:[#allocation5 + $0x48] sm:$0xff]
    %v56 = vld [vmem:[#allocation5 + $0x50] sm:$0xff]
    %v57 = vld [vmem:[#allocation5 + $0x58] sm:$0xff]
    %v58 = vld [vmem:[#allocation5 + $0x60] sm:$0xff]
    %v59 = vld [vmem:[#allocation5 + $0x68] sm:$0xff]
    %v60 = vld [vmem:[#allocation5 + $0x70] sm:$0xff]
    %v61 = vld [vmem:[#allocation5 + $0x78] sm:$0xff]
    %v62 = vld [vmem:[#allocation5 + $0x80] sm:$0xff]
    %v63 = vld [vmem:[#allocation5 + $0x88] sm:$0xff]
    %v64 = vld [vmem:[#allocation5 + $0x90] sm:$0xff]
    %v65 = vld [vmem:[#allocation5 + $0x98] sm:$0xff]
    %v66 = vld [vmem:[#allocation5 + $0xa0] sm:$0xff]
    %v67 = vld [vmem:[#allocation5 + $0xa8] sm:$0xff]
    %v68 = vld [vmem:[#allocation5 + $0xb0] sm:$0xff]
    %v69 = vld [vmem:[#allocation5 + $0xb8] sm:$0xff]
    %v70 = vld [vmem:[#allocation5 + $0xc0] sm:$0xff]
    %v71 = vld [vmem:[#allocation5 + $0xc8] sm:$0xff]
    %v72 = vld [vmem:[#allocation5 + $0xd0] sm:$0xff]
    %v73 = vld [vmem:[#allocation5 + $0xd8] sm:$0xff]
    %v74 = vld [vmem:[#allocation5 + $0xe0] sm:$0xff]
    %v75 = vld [vmem:[#allocation5 + $0xe8] sm:$0xff]
    %v76 = vld [vmem:[#allocation5 + $0xf0] sm:$0xff]
    %v77 = vld [vmem:[#allocation5 + $0xf8] sm:$0xff]
    %v78 = vld [vmem:[%s2] sm:$0xf]
    %v80 = vlaneseq
    %v81 = vshrl.u32 %v80, 7
    %v82 = vsub.s32 0, %v81
    %v83 = vrot.slane %v78, %v82
    %v84 = vlaneseq
    %v85 = vshrl.u32 %v84, 7
    %v86 = vsub.s32 1, %v85
    %v87 = vrot.slane %v78, %v86
    %v88 = vlaneseq
    %v89 = vshrl.u32 %v88, 7
    %v90 = vsub.s32 2, %v89
    %v91 = vrot.slane %v78, %v90
    %v92 = vlaneseq
    %v93 = vshrl.u32 %v92, 7
    %v94 = vsub.s32 3, %v93
    %v95 = vrot.slane %v78, %v94
    %v102 = vunpack.c.l.b16 %v44
    %v103 = vunpack.c.l.b16 %v45
    %v104 = vpack.c.b16 %v103, %v102
    %v138 = vunpack.c.l.b16 %v46
    %v139 = vunpack.c.h.b16 %v46
    %v140 = vunpack.c.l.b16 %v47
    %v141 = vunpack.c.h.b16 %v47
    %v142 = vunpack.c.l.b16 %v48
    %v143 = vunpack.c.h.b16 %v48
    %v144 = vunpack.c.l.b16 %v49
    %v145 = vunpack.c.h.b16 %v49
    %v146 = vunpack.c.l.b16 %v50
    %v147 = vunpack.c.h.b16 %v50
    %v148 = vunpack.c.l.b16 %v51
    %v149 = vunpack.c.h.b16 %v51
    %v150 = vunpack.c.l.b16 %v52
    %v151 = vunpack.c.h.b16 %v52
    %v152 = vunpack.c.l.b16 %v53
    %v153 = vunpack.c.h.b16 %v53
    %v154 = vunpack.c.l.b16 %v54
    %v155 = vunpack.c.h.b16 %v54
    %v156 = vunpack.c.l.b16 %v55
    %v157 = vunpack.c.h.b16 %v55
    %v158 = vunpack.c.l.b16 %v56
    %v159 = vunpack.c.h.b16 %v56
    %v160 = vunpack.c.l.b16 %v57
    %v161 = vunpack.c.h.b16 %v57
    %v162 = vunpack.c.l.b16 %v58
    %v163 = vunpack.c.h.b16 %v58
    %v164 = vunpack.c.l.b16 %v59
    %v165 = vunpack.c.h.b16 %v59
    %v166 = vunpack.c.l.b16 %v60
    %v167 = vunpack.c.h.b16 %v60
    %v168 = vunpack.c.l.b16 %v61
    %v169 = vunpack.c.h.b16 %v61
    %v170 = vunpack.c.l.b16 %v62
    %v171 = vunpack.c.h.b16 %v62
    %v172 = vunpack.c.l.b16 %v63
    %v173 = vunpack.c.h.b16 %v63
    %v174 = vunpack.c.l.b16 %v64
    %v175 = vunpack.c.h.b16 %v64
    %v176 = vunpack.c.l.b16 %v65
    %v177 = vunpack.c.h.b16 %v65
    %v178 = vunpack.c.l.b16 %v66
    %v179 = vunpack.c.h.b16 %v66
    %v180 = vunpack.c.l.b16 %v67
    %v181 = vunpack.c.h.b16 %v67
    %v182 = vunpack.c.l.b16 %v68
    %v183 = vunpack.c.h.b16 %v68
    %v184 = vunpack.c.l.b16 %v69
    %v185 = vunpack.c.h.b16 %v69
    %v186 = vunpack.c.l.b16 %v70
    %v187 = vunpack.c.h.b16 %v70
    %v188 = vunpack.c.l.b16 %v71
    %v189 = vunpack.c.h.b16 %v71
    %v190 = vunpack.c.l.b16 %v72
    %v191 = vunpack.c.h.b16 %v72
    %v192 = vunpack.c.l.b16 %v73
    %v193 = vunpack.c.h.b16 %v73
    %v194 = vunpack.c.l.b16 %v74
    %v195 = vunpack.c.h.b16 %v74
    %v196 = vunpack.c.l.b16 %v75
    %v197 = vunpack.c.h.b16 %v75
    %v198 = vunpack.c.l.b16 %v76
    %v199 = vunpack.c.h.b16 %v76
    %v200 = vunpack.c.l.b16 %v77
    %v201 = vunpack.c.h.b16 %v77
    %v202 = vpack.c.b16 %v142, %v138
    %v203 = vpack.c.b16 %v143, %v139
    %v204 = vpack.c.b16 %v144, %v140
    %v205 = vpack.c.b16 %v145, %v141
    %v206 = vpack.c.b16 %v150, %v146
    %v207 = vpack.c.b16 %v151, %v147
    %v208 = vpack.c.b16 %v152, %v148
    %v209 = vpack.c.b16 %v153, %v149
    %v210 = vpack.c.b16 %v158, %v154
    %v211 = vpack.c.b16 %v159, %v155
    %v212 = vpack.c.b16 %v160, %v156
    %v213 = vpack.c.b16 %v161, %v157
    %v214 = vpack.c.b16 %v166, %v162
    %v215 = vpack.c.b16 %v167, %v163
    %v216 = vpack.c.b16 %v168, %v164
    %v217 = vpack.c.b16 %v169, %v165
    %v218 = vpack.c.b16 %v174, %v170
    %v219 = vpack.c.b16 %v175, %v171
    %v220 = vpack.c.b16 %v176, %v172
    %v221 = vpack.c.b16 %v177, %v173
    %v222 = vpack.c.b16 %v182, %v178
    %v223 = vpack.c.b16 %v183, %v179
    %v224 = vpack.c.b16 %v184, %v180
    %v225 = vpack.c.b16 %v185, %v181
    %v226 = vpack.c.b16 %v190, %v186
    %v227 = vpack.c.b16 %v191, %v187
    %v228 = vpack.c.b16 %v192, %v188
    %v229 = vpack.c.b16 %v193, %v189
    %v230 = vpack.c.b16 %v198, %v194
    %v231 = vpack.c.b16 %v199, %v195
    %v232 = vpack.c.b16 %v200, %v196
    %v233 = vpack.c.b16 %v201, %v197
    %266 = vmatprep.subr.bf16.mxu0 %v203
    %267 = vmatpush1.bf16.msra.mxu0 %v202
    %268 = vmatprep.subr.bf16.mxu0 %v207
    %269 = vmatpush1.bf16.msra.mxu0 %v206
    %270 = vmatprep.subr.bf16.mxu0 %v211
    %271 = vmatpush1.bf16.msra.mxu0 %v210
    %272 = vmatprep.subr.bf16.mxu0 %v215
    %273 = vmatpush1.bf16.msra.mxu0 %v214
    %274 = vmatprep.subr.bf16.mxu0 %v219
    %275 = vmatpush1.bf16.msra.mxu0 %v218
    %276 = vmatprep.subr.bf16.mxu0 %v223
    %277 = vmatpush1.bf16.msra.mxu0 %v222
    %278 = vmatprep.subr.bf16.mxu0 %v227
    %279 = vmatpush1.bf16.msra.mxu0 %v226
    %280 = vmatprep.subr.bf16.mxu0 %v231
    %281 = vmatpush1.bf16.msra.mxu0 %v230
    %282 = vmatprep.subr.bf16.mxu0 0
    %283 = vmatpush1.bf16.msra.mxu0 0
    %284 = vmatprep.subr.bf16.mxu0 0
    %285 = vmatpush1.bf16.msra.mxu0 0
    %286 = vmatprep.subr.bf16.mxu0 0
    %287 = vmatpush1.bf16.msra.mxu0 0
    %288 = vmatprep.subr.bf16.mxu0 0
    %289 = vmatpush1.bf16.msra.mxu0 0
    %290 = vmatprep.subr.bf16.mxu0 0
    %291 = vmatpush1.bf16.msra.mxu0 0
    %292 = vmatprep.subr.bf16.mxu0 0
    %293 = vmatpush1.bf16.msra.mxu0 0
    %294 = vmatprep.subr.bf16.mxu0 0
    %295 = vmatpush1.bf16.msra.mxu0 0
    %296 = vmatprep.subr.bf16.mxu0 0
    %297 = vmatpush1.bf16.msra.mxu0 0
    %298 = vmatprep.mubr.bf16.mxu0 0
    %299 = vmatmul.mubr.bf16.gmra.mrb[0].mxu0 %v104
    %v300 = vpop.f32.mrb[0].mxu0
    %v301 = vadd.f32 %v83, %v300
    %v302 = vpop.f32.mrb[0].mxu0
    %v303 = vadd.f32 %v87, %v302
    %v304 = vpop.f32.mrb[0].mxu0
    %v305 = vadd.f32 %v83, %v304
    %v306 = vpop.f32.mrb[0].mxu0
    %v307 = vadd.f32 %v87, %v306
    %308 = vdwg.mxu0
    %309 = vmatprep.subr.bf16.mxu0 %v205
    %310 = vmatpush1.bf16.msra.mxu0 %v204
    %311 = vmatprep.subr.bf16.mxu0 %v209
    %312 = vmatpush1.bf16.msra.mxu0 %v208
    %313 = vmatprep.subr.bf16.mxu0 %v213
    %314 = vmatpush1.bf16.msra.mxu0 %v212
    %315 = vmatprep.subr.bf16.mxu0 %v217
    %316 = vmatpush1.bf16.msra.mxu0 %v216
    %317 = vmatprep.subr.bf16.mxu0 %v221
    %318 = vmatpush1.bf16.msra.mxu0 %v220
    %319 = vmatprep.subr.bf16.mxu0 %v225
    %320 = vmatpush1.bf16.msra.mxu0 %v224
    %321 = vmatprep.subr.bf16.mxu0 %v229
    %322 = vmatpush1.bf16.msra.mxu0 %v228
    %323 = vmatprep.subr.bf16.mxu0 %v233
    %324 = vmatpush1.bf16.msra.mxu0 %v232
    %325 = vmatprep.subr.bf16.mxu0 0
    %326 = vmatpush1.bf16.msra.mxu0 0
    %327 = vmatprep.subr.bf16.mxu0 0
    %328 = vmatpush1.bf16.msra.mxu0 0
    %329 = vmatprep.subr.bf16.mxu0 0
    %330 = vmatpush1.bf16.msra.mxu0 0
    %331 = vmatprep.subr.bf16.mxu0 0
    %332 = vmatpush1.bf16.msra.mxu0 0
    %333 = vmatprep.subr.bf16.mxu0 0
    %334 = vmatpush1.bf16.msra.mxu0 0
    %335 = vmatprep.subr.bf16.mxu0 0
    %336 = vmatpush1.bf16.msra.mxu0 0
    %337 = vmatprep.subr.bf16.mxu0 0
    %338 = vmatpush1.bf16.msra.mxu0 0
    %339 = vmatprep.subr.bf16.mxu0 0
    %340 = vmatpush1.bf16.msra.mxu0 0
    %341 = vmatprep.mubr.bf16.mxu0 0
    %342 = vmatmul.mubr.bf16.gmra.mrb[0].mxu0 %v104
    %v343 = vpop.f32.mrb[0].mxu0
    %v344 = vadd.f32 %v91, %v343
    %v345 = vpop.f32.mrb[0].mxu0
    %v346 = vadd.f32 %v95, %v345
    %v347 = vpop.f32.mrb[0].mxu0
    %v348 = vadd.f32 %v91, %v347
    %v349 = vpop.f32.mrb[0].mxu0
    %v350 = vadd.f32 %v95, %v349
    %351 = vdwg.mxu0
    %v352 = vmax.f32 %v303, 0.0
    %v353 = vmax.f32 %v307, 0.0
    %v354 = vand.u32 2147483647, %v303
    %v355 = vand.u32 2147483647, %v307
    %v356 = vsub.f32 0.0, %v354
    %v357 = vsub.f32 0.0, %v355
    %v358 = vmul.f32 %v356, 1.442695
    %v359 = vpow.pop %v358
    %v360 = vmul.f32 %v357, 1.442695
    %v361 = vpow.pop %v360
    %v362 = vadd.f32 %v359, 1.0
    %v363 = vlog2.pop %v362
    %v364 = vmul.f32 %v363, 0.6931472
    %v365 = vmul.f32 -0.5, %v359
    %v366 = vadd.f32 %v365, 1.0
    %v367 = vmul.f32 %v366, %v359
    %v368 = vand.u32 2147483647, %v359
    %vm369 = vcmp.lt.f32.partialorder %v368, 0.0004427343
    %v370 = vsel %vm369, %v367, %v364
    %v371 = vadd.f32 %v361, 1.0
    %v372 = vlog2.pop %v371
    %v373 = vmul.f32 %v372, 0.6931472
    %v374 = vmul.f32 -0.5, %v361
    %v375 = vadd.f32 %v374, 1.0
    %v376 = vmul.f32 %v375, %v361
    %v377 = vand.u32 2147483647, %v361
    %vm378 = vcmp.lt.f32.partialorder %v377, 0.0004427343
    %v379 = vsel %vm378, %v376, %v373
    %v380 = vadd.f32 %v352, %v370
    %v381 = vadd.f32 %v353, %v379
    %v382 = vmax.f32 %v344, 0.0
    %v383 = vmax.f32 %v348, 0.0
    %v384 = vand.u32 2147483647, %v344
    %v385 = vand.u32 2147483647, %v348
    %v386 = vsub.f32 0.0, %v384
    %v387 = vsub.f32 0.0, %v385
    %v388 = vmul.f32 %v386, 1.442695
    %v389 = vpow.pop %v388
    %v390 = vmul.f32 %v387, 1.442695
    %v391 = vpow.pop %v390
    %v392 = vadd.f32 %v389, 1.0
    %v393 = vlog2.pop %v392
    %v394 = vmul.f32 %v393, 0.6931472
    %v395 = vmul.f32 -0.5, %v389
    %v396 = vadd.f32 %v395, 1.0
    %v397 = vmul.f32 %v396, %v389
    %v398 = vand.u32 2147483647, %v389
    %vm399 = vcmp.lt.f32.partialorder %v398, 0.0004427343
    %v400 = vsel %vm399, %v397, %v394
    %v401 = vadd.f32 %v391, 1.0
    %v402 = vlog2.pop %v401
    %v403 = vmul.f32 %v402, 0.6931472
    %v404 = vmul.f32 -0.5, %v391
    %v405 = vadd.f32 %v404, 1.0
    %v406 = vmul.f32 %v405, %v391
    %v407 = vand.u32 2147483647, %v391
    %vm408 = vcmp.lt.f32.partialorder %v407, 0.0004427343
    %v409 = vsel %vm408, %v406, %v403
    %v410 = vadd.f32 %v382, %v400
    %v411 = vadd.f32 %v383, %v409
    %v412 = vmax.f32 %v346, 0.0
    %v413 = vmax.f32 %v350, 0.0
    %v414 = vand.u32 2147483647, %v346
    %v415 = vand.u32 2147483647, %v350
    %v416 = vsub.f32 0.0, %v414
    %v417 = vsub.f32 0.0, %v415
    %v418 = vmul.f32 %v416, 1.442695
    %v419 = vpow.pop %v418
    %v420 = vmul.f32 %v417, 1.442695
    %v421 = vpow.pop %v420
    %v422 = vadd.f32 %v419, 1.0
    %v423 = vlog2.pop %v422
    %v424 = vmul.f32 %v423, 0.6931472
    %v425 = vmul.f32 -0.5, %v419
    %v426 = vadd.f32 %v425, 1.0
    %v427 = vmul.f32 %v426, %v419
    %v428 = vand.u32 2147483647, %v419
    %vm429 = vcmp.lt.f32.partialorder %v428, 0.0004427343
    %v430 = vsel %vm429, %v427, %v424
    %v431 = vadd.f32 %v421, 1.0
    %v432 = vlog2.pop %v431
    %v433 = vmul.f32 %v432, 0.6931472
    %v434 = vmul.f32 -0.5, %v421
    %v435 = vadd.f32 %v434, 1.0
    %v436 = vmul.f32 %v435, %v421
    %v437 = vand.u32 2147483647, %v421
    %vm438 = vcmp.lt.f32.partialorder %v437, 0.0004427343
    %v439 = vsel %vm438, %v436, %v433
    %v440 = vadd.f32 %v412, %v430
    %v441 = vadd.f32 %v413, %v439
    %v442 = vrcp.pop %v410
    %v443 = vrcp.pop %v411
    %v444 = vrcp.pop %v380
    %v445 = vrcp.pop %v381
    %v446 = vmul.f32 %v440, %v442
    %v447 = vmul.f32 %v441, %v443
    %v448 = vmul.f32 %v440, %v444
    %v449 = vmul.f32 %v441, %v445
    %v450 = vmul.f32 %v448, %v410
    %v451 = vmul.f32 %v449, %v411
    %452 = vst [vmem:[#allocation7] sm:$0xff] %v301
    %453 = vst [vmem:[#allocation7 + $0x30] sm:$0xff] %v305
    %454 = vst [vmem:[#allocation7 + $0x8] sm:$0xff] %v380
    %455 = vst [vmem:[#allocation7 + $0x38] sm:$0xff] %v381
    %v456 = vadd.f32 %v410, 1.0
    %v457 = vadd.f32 %v411, 1.0
    %458 = vst [vmem:[#allocation7 + $0x10] sm:$0xff] %v456
    %459 = vst [vmem:[#allocation7 + $0x40] sm:$0xff] %v457
    %460 = vst [vmem:[#allocation7 + $0x18] sm:$0xff] %v440
    %461 = vst [vmem:[#allocation7 + $0x48] sm:$0xff] %v441
    %462 = vst [vmem:[#allocation7 + $0x20] sm:$0xff] %v446
    %463 = vst [vmem:[#allocation7 + $0x50] sm:$0xff] %v447
    %464 = vst [vmem:[#allocation7 + $0x28] sm:$0xff] %v450
    %465 = vst [vmem:[#allocation7 + $0x58] sm:$0xff] %v451
    // Predicated region
    $region22: #{tpu_custom_call.1} parent=1 // pred_check
      _
    $region23: #{tpu_custom_call.1} parent=1 // pred_check_branch
      %467 = sbr.rel (0) target = $region25
    $region24: #{tpu_custom_call.1} parent=1 // pred_region
      %s469 = ssub.s32 1536, 1536
      %470 = vsyncadd [#allocation4], %s469
      %s471 = sshll.u32 [#allocation7], 4
      %s472 = int_to_ptr.vmem [resolvable:$true] %s471
      %477 = dma.vmem_to_hbm [thread:$0]  %s472, 1536, %s3, [#allocation4], 768, 768, 48
    $region25: #{tpu_custom_call.1} parent=1 // pred_fallthru
      _
    // Predicated region
    $region26: #{tpu_custom_call.1} parent=1 // pred_check
      _
    $region27: #{tpu_custom_call.1} parent=1 // pred_check_branch
      %479 = sbr.rel (0) target = $region29
    $region28: #{tpu_custom_call.1} parent=1 // pred_region
      %480 = dma.done [#allocation4], 1536
    $region29: #{tpu_custom_call.1} parent=1 // pred_fallthru
      _
    %481 = vsyncpa [#allocation3], 1
    %482 = vsyncpa [#allocation6], 1
    %483 = vsyncpa [#allocation4], 1

</llo_original>
